<compile_context>
chip_gen: v6e
topology: v6e:2x2x1
jax: 0.10.0
libtpu: 0.0.40
codegen_flags: <defaults>
</compile_context>

<pallas_src>
import jax
import jax.numpy as jnp
from jax.experimental import pallas as pl
from jax.experimental.pallas import tpu as pltpu

_LANE = 128


def _tpu_vmem_capacity_bytes():
    """Best-effort physical VMEM size; falls back to the smallest (v7x)."""
    try:
        info = pltpu.get_tpu_info()
        for attr in ("vmem_capacity_bytes", "vmem_size_bytes", "vmem_bytes"):
            v = getattr(info, attr, None)
            if v:
                return int(v)
    except Exception:
        pass
    return 64 << 20


def _choose_tiles(N, C, S, x_itemsize, x_buf_budget):
    # N tile: keep >=2 parallel grid steps whenever N >= 2 so both v7x
    # TensorCores get work; cap at 8 rows per step.  Output is carried as
    # (N, 1, K), so small n_tile never hits the (8,128) sublane rule and a
    # partial last N block is simply dropped on write.
    n_tile = max(1, min(8, -(-N // 2)))
    # C tile: split only when C is large and divides evenly (keeps the weight
    # block a clean slab and avoids masking the matmul reduction).
    c_tile = C
    if C > 1024:
        for cand in (1024, 512, 256, 128):
            if C % cand == 0:
                c_tile = cand
                break
    # S tile: as many 128-lane groups as the per-buffer DMA budget allows
    # (longer contiguous rows per DMA, fewer grid steps); cap at 4096 lanes.
    cap_lanes = x_buf_budget // max(n_tile * c_tile * x_itemsize, 1)
    cap = max(_LANE, min(4096, (cap_lanes // _LANE) * _LANE))
    s_tile = S if S <= cap else cap
    return n_tile, c_tile, s_tile


def _make_kernel(S, s_tile, lane_w, n_slabs, grid_s, mxu_dtype):
    inv_s = 1.0 / float(S)
    s_rem = S - (grid_s - 1) * s_tile          # valid lanes in the last S block
    mask_tail = s_rem < s_tile

    def _slab(x_ref, k):
        # Load + cast one lane_w slab straight from the ref: no full-tile f32
        # intermediate materialized in VMEM/vregs.
        return x_ref[:, :, k * lane_w:(k + 1) * lane_w].astype(jnp.float32)

    def _acc_full(x_ref, acc_ref):
        part = _slab(x_ref, 0)
        for k in range(1, n_slabs):
            part = part + _slab(x_ref, k)
        acc_ref[...] += part

    def _acc_tail(x_ref, acc_ref):
        # Last S block only: slabs fully past S are skipped entirely, the
        # boundary slab gets a compile-time-constant lane mask.
        part = None
        for k in range(n_slabs):
            lo = k * lane_w
            if lo >= s_rem:
                break
            v = _slab(x_ref, k)
            if lo + lane_w > s_rem:
                lane_idx = jax.lax.broadcasted_iota(jnp.int32, v.shape, 2)
                v = jnp.where(lane_idx < (s_rem - lo), v, 0.0)
            part = v if part is None else part + v
        acc_ref[...] += part

    def kernel(x_ref, w_ref, b_ref, o_ref, acc_ref, logits_ref):
        c = pl.program_id(1)
        s = pl.program_id(2)
        last_c = pl.num_programs(1) - 1
        last_s = grid_s - 1

        @pl.when(s == 0)
        def _init_acc():
            acc_ref[...] = jnp.zeros_like(acc_ref)

        @pl.when(jnp.logical_and(c == 0, s == 0))
        def _init_logits():
            logits_ref[...] = jnp.zeros_like(logits_ref)

        # Hot loop: VPU-only slab folds.  The tail mask is gated behind the
        # last S step so every other step is a plain add hidden under the DMA.
        if mask_tail:
            @pl.when(s < last_s)
            def _main_steps():
                _acc_full(x_ref, acc_ref)

            @pl.when(s == last_s)
            def _tail_step():
                _acc_tail(x_ref, acc_ref)
        else:
            _acc_full(x_ref, acc_ref)

        @pl.when(s == last_s)
        def _pool_and_matmul():
            # One XLU lane-reduce + exact 1/S normalization, then a tiny MXU
            # matmul accumulated over C tiles into the logits scratch.
            pooled = jnp.sum(acc_ref[...], axis=-1) * inv_s     # (n_tile, c_tile)
            logits_ref[...] += jnp.dot(pooled.astype(mxu_dtype),
                                       w_ref[...].astype(mxu_dtype),
                                       preferred_element_type=jnp.float32)

        @pl.when(jnp.logical_and(c == last_c, s == last_s))
        def _finalize():
            # TODO(synk): training-mode dropout (pltpu.prng_* masking) not
            # implemented; inference dropout is the identity.
            out = logits_ref[...] + b_ref[...].astype(jnp.float32)
            o_ref[...] = out.reshape(o_ref.shape).astype(o_ref.dtype)

    return kernel


def classifier_head(x_ncdhw, weight, bias):
    """x_ncdhw: (N, C, T, H, W); weight: (C, num_classes) [PyTorch weight.T];
    bias: (num_classes,)."""
    N, C, T, H, W = x_ncdhw.shape
    num_classes = weight.shape[1]
    S = T * H * W

    # Merging trailing dims is layout-free; no HBM copy and no dtype upcast.
    x = x_ncdhw.reshape(N, C, S)
    b2 = bias.reshape(1, num_classes)
    out_dtype = jnp.result_type(x.dtype, weight.dtype)
    mxu_dtype = jnp.bfloat16 if weight.dtype == jnp.bfloat16 else jnp.float32

    x_item = jnp.dtype(x.dtype).itemsize
    w_item = jnp.dtype(weight.dtype).itemsize
    b_item = jnp.dtype(bias.dtype).itemsize
    o_item = jnp.dtype(out_dtype).itemsize

    # Generation-aware budgets: 128-MiB parts (v5e/v6e) can double-buffer much
    # larger x blocks than 64-MiB v7x.
    vmem_cap = _tpu_vmem_capacity_bytes()
    if vmem_cap >= (100 << 20):
        x_buf_budget, vmem_ceiling = 10 << 20, 80 << 20
    else:
        x_buf_budget, vmem_ceiling = 5 << 20, 44 << 20

    n_tile, c_tile, s_tile = _choose_tiles(N, C, S, x_item, x_buf_budget)
    if s_tile % _LANE == 0:
        lane_w, n_slabs = _LANE, s_tile // _LANE
    else:
        lane_w, n_slabs = s_tile, 1          # full-extent S block, single slab

    grid = (pl.cdiv(N, n_tile), C // c_tile, pl.cdiv(S, s_tile))
    kernel = _make_kernel(S, s_tile, lane_w, n_slabs, grid[2], mxu_dtype)

    # Advisory cost: this kernel is HBM-bandwidth bound.
    cost = pl.CostEstimate(
        flops=N * C * S + 2 * N * C * num_classes,
        transcendentals=0,
        bytes_accessed=(N * C * S * x_item
                        + C * num_classes * w_item
                        + num_classes * b_item
                        + N * num_classes * o_item),
    )

    # Scoped-VMEM request: double-buffered blocks + scratch with headroom,
    # clamped by generation.
    est = (2 * n_tile * c_tile * s_tile * x_item
           + 2 * c_tile * num_classes * w_item
           + 2 * num_classes * b_item
           + 2 * n_tile * num_classes * o_item
           + n_tile * c_tile * lane_w * 4
           + n_tile * num_classes * 4)
    vmem_limit = int(min(max(2 * est, 32 << 20), vmem_ceiling))

    out3 = pl.pallas_call(
        kernel,
        out_shape=jax.ShapeDtypeStruct((N, 1, num_classes), out_dtype),
        grid_spec=pltpu.PrefetchScalarGridSpec(
            num_scalar_prefetch=0,
            grid=grid,
            in_specs=[
                # Activations: streamed / double-buffered along S (and C).
                # TODO(synk): sweep pipeline_mode=pl.Buffered(3) on 128-MiB
                # parts when the S grid has >=3 steps and xprof shows exposed DMA.
                pl.BlockSpec((n_tile, c_tile, s_tile), lambda n, c, s: (n, c, s)),
                # Weight: re-DMA'd only when the C tile changes.
                pl.BlockSpec((c_tile, num_classes), lambda n, c, s: (c, 0)),
                # Bias: constant index map -> stays VMEM resident.
                pl.BlockSpec((1, num_classes), lambda n, c, s: (0, 0)),
            ],
            out_specs=pl.BlockSpec((n_tile, 1, num_classes),
                                   lambda n, c, s: (n, 0, 0)),
            scratch_shapes=[
                pltpu.VMEM((n_tile, c_tile, lane_w), jnp.float32),   # pooled acc
                pltpu.VMEM((n_tile, num_classes), jnp.float32),      # logits acc
            ],
        ),
        compiler_params=pltpu.CompilerParams(
            dimension_semantics=("parallel", "arbitrary", "arbitrary"),
            vmem_limit_bytes=vmem_limit,
        ),
        cost_estimate=cost,
    )(x, weight, b2)
    return out3.reshape(N, num_classes)


def _ref(x, w, b):
    N, C = x.shape[0], x.shape[1]
    pooled = jnp.mean(x.astype(jnp.float32).reshape(N, C, -1), axis=-1)
    return pooled @ w.astype(jnp.float32) + b.astype(jnp.float32)


if __name__ == "__main__":
    key = jax.random.PRNGKey(0)
    init_std = 0.01

    # ---- Case 1: f32, S = 1024, single S block, 2 parallel N steps.
    N, C, T, H, W = 2, 32, 4, 16, 16
    K = 16
    k1, k2, key = jax.random.split(key, 3)
    x = jax.random.normal(k1, (N, C, T, H, W), dtype=jnp.float32)
    # PyTorch Linear weight is (out, in); stored transposed (in, out) here.
    w = init_std * jax.random.normal(k2, (C, K), dtype=jnp.float32)
    b = jnp.zeros((K,), dtype=jnp.float32)
    out = jax.block_until_ready(classifier_head(x, w, b))
    ref = _ref(x.reshape(N, C, -1), w, b)
    assert out.shape == (N, K)
    assert jnp.allclose(out, ref, atol=1e-5, rtol=1e-4), \
        float(jnp.max(jnp.abs(out - ref)))

    # ---- Case 2: bf16, N=3 (partial last N block), bf16 MXU path.
    N2, C2, T2, H2, W2 = 3, 256, 5, 12, 12
    K2 = 24
    k3, k4, key = jax.random.split(key, 3)
    x2 = jax.random.normal(k3, (N2, C2, T2, H2, W2), dtype=jnp.float32).astype(jnp.bfloat16)
    w2 = (init_std * jax.random.normal(k4, (C2, K2), dtype=jnp.float32)).astype(jnp.bfloat16)
    b2 = jnp.zeros((K2,), dtype=jnp.bfloat16)
    out2 = jax.block_until_ready(classifier_head(x2, w2, b2))
    ref2 = _ref(x2.reshape(N2, C2, -1), w2, b2)
    assert out2.shape == (N2, K2)
    assert jnp.allclose(out2.astype(jnp.float32), ref2, atol=2e-3, rtol=2e-2), \
        float(jnp.max(jnp.abs(out2.astype(jnp.float32) - ref2)))

    # ---- Case 3: f32, large S = 20160 -> multiple pipelined S steps + masked tail.
    N3, C3, T3, H3, W3 = 2, 8, 5, 64, 63
    K3 = 8
    k5, k6, key = jax.random.split(key, 3)
    x3 = jax.random.normal(k5, (N3, C3, T3, H3, W3), dtype=jnp.float32)
    w3 = init_std * jax.random.normal(k6, (C3, K3), dtype=jnp.float32)
    b3 = 0.1 * jnp.ones((K3,), dtype=jnp.float32)
    out3 = jax.block_until_ready(classifier_head(x3, w3, b3))
    ref3 = _ref(x3.reshape(N3, C3, -1), w3, b3)
    assert out3.shape == (N3, K3)
    assert jnp.allclose(out3, ref3, atol=1e-5, rtol=1e-4), \
        float(jnp.max(jnp.abs(out3 - ref3)))

    # ---- Case 4: f32, C = 2048 (CSN default) -> C grid axis, logits accumulation.
    N4, C4, T4, H4, W4 = 2, 2048, 1, 8, 8
    K4 = 10
    k7, k8, key = jax.random.split(key, 3)
    x4 = jax.random.normal(k7, (N4, C4, T4, H4, W4), dtype=jnp.float32)
    w4 = init_std * jax.random.normal(k8, (C4, K4), dtype=jnp.float32)
    b4 = jnp.zeros((K4,), dtype=jnp.float32)
    out4 = jax.block_until_ready(classifier_head(x4, w4, b4))
    ref4 = _ref(x4.reshape(N4, C4, -1), w4, b4)
    assert out4.shape == (N4, K4)
    assert jnp.allclose(out4, ref4, atol=1e-5, rtol=1e-4), \
        float(jnp.max(jnp.abs(out4 - ref4)))

    print("KERNEL_OK")
</pallas_src>

<mosaic_0001>
module attributes {stable_mosaic.version = 11 : i64} {
  func.func @kernel(%arg0: i32, %arg1: i32, %arg2: i32, %arg3: memref<1x32x1024xf32, #tpu.memory_space<vmem>>, %arg4: memref<32x16xf32, #tpu.memory_space<vmem>>, %arg5: memref<1x16xf32, #tpu.memory_space<vmem>>, %arg6: memref<1x1x16xf32, #tpu.memory_space<vmem>>, %arg7: memref<1x32x128xf32, #tpu.memory_space<vmem>>, %arg8: memref<1x16xf32, #tpu.memory_space<vmem>>) attributes {dimension_semantics = [#tpu.dimension_semantics<parallel>, #tpu.dimension_semantics<arbitrary>, #tpu.dimension_semantics<arbitrary>], iteration_bounds = array<i64: 2, 1, 1>, scalar_prefetch = 0 : i64, scratch_operands = 2 : i64, tpu.core_type = #tpu.core_type<tc>, window_params = [{transform_indices = @transform_0, window_bounds = array<i64: 1, 32, 1024>}, {transform_indices = @transform_1, window_bounds = array<i64: 32, 16>}, {pipeline_mode = #tpu.pipeline_mode<synchronous>, transform_indices = @transform_2, window_bounds = array<i64: 1, 16>}, {transform_indices = @transform_3, window_bounds = array<i64: 1, 1, 16>}]} {
    %c0_i32 = arith.constant 0 : i32
    %0 = arith.cmpi eq, %arg2, %c0_i32 : i32
    %1 = arith.extui %0 : i1 to i32
    %c0_i32_0 = arith.constant 0 : i32
    %2 = arith.cmpi ne, %1, %c0_i32_0 : i32
    scf.if %2 {
      %cst = arith.constant 0.000000e+00 : f32
      %34 = vector.broadcast %cst : f32 to vector<1x32x128xf32>
      %c0_31 = arith.constant 0 : index
      %c0_32 = arith.constant 0 : index
      %c0_33 = arith.constant 0 : index
      %35 = vector.load %arg7[%c0_31, %c0_32, %c0_33] : memref<1x32x128xf32, #tpu.memory_space<vmem>>, vector<1x32x128xf32>
      tpu.vector_store %arg7[%c0_31, %c0_32, %c0_33], %34 {strides = array<i32>} : memref<1x32x128xf32, #tpu.memory_space<vmem>>, vector<1x32x128xf32>,
    } else {
    }
    %c0_i32_1 = arith.constant 0 : i32
    %3 = arith.cmpi eq, %arg1, %c0_i32_1 : i32
    %c0_i32_2 = arith.constant 0 : i32
    %4 = arith.cmpi eq, %arg2, %c0_i32_2 : i32
    %5 = arith.andi %3, %4 : i1
    %6 = arith.extui %5 : i1 to i32
    %c0_i32_3 = arith.constant 0 : i32
    %7 = arith.cmpi ne, %6, %c0_i32_3 : i32
    scf.if %7 {
      %cst = arith.constant 0.000000e+00 : f32
      %34 = vector.broadcast %cst : f32 to vector<1x16xf32>
      %c0_31 = arith.constant 0 : index
      %c0_32 = arith.constant 0 : index
      %35 = vector.load %arg8[%c0_31, %c0_32] : memref<1x16xf32, #tpu.memory_space<vmem>>, vector<1x16xf32>
      tpu.vector_store %arg8[%c0_31, %c0_32], %34 {strides = array<i32>} : memref<1x16xf32, #tpu.memory_space<vmem>>, vector<1x16xf32>,
    } else {
    }
    %c0 = arith.constant 0 : index
    %c0_4 = arith.constant 0 : index
    %c0_5 = arith.constant 0 : index
    %8 = vector.load %arg3[%c0, %c0_4, %c0_5] : memref<1x32x1024xf32, #tpu.memory_space<vmem>>, vector<1x32x128xf32>
    %c0_6 = arith.constant 0 : index
    %c0_7 = arith.constant 0 : index
    %c128 = arith.constant 128 : index
    %9 = vector.load %arg3[%c0_6, %c0_7, %c128] : memref<1x32x1024xf32, #tpu.memory_space<vmem>>, vector<1x32x128xf32>
    %10 = arith.addf %8, %9 : vector<1x32x128xf32>
    %c0_8 = arith.constant 0 : index
    %c0_9 = arith.constant 0 : index
    %c256 = arith.constant 256 : index
    %11 = vector.load %arg3[%c0_8, %c0_9, %c256] : memref<1x32x1024xf32, #tpu.memory_space<vmem>>, vector<1x32x128xf32>
    %12 = arith.addf %10, %11 : vector<1x32x128xf32>
    %c0_10 = arith.constant 0 : index
    %c0_11 = arith.constant 0 : index
    %c384 = arith.constant 384 : index
    %13 = vector.load %arg3[%c0_10, %c0_11, %c384] : memref<1x32x1024xf32, #tpu.memory_space<vmem>>, vector<1x32x128xf32>
    %14 = arith.addf %12, %13 : vector<1x32x128xf32>
    %c0_12 = arith.constant 0 : index
    %c0_13 = arith.constant 0 : index
    %c512 = arith.constant 512 : index
    %15 = vector.load %arg3[%c0_12, %c0_13, %c512] : memref<1x32x1024xf32, #tpu.memory_space<vmem>>, vector<1x32x128xf32>
    %16 = arith.addf %14, %15 : vector<1x32x128xf32>
    %c0_14 = arith.constant 0 : index
    %c0_15 = arith.constant 0 : index
    %c640 = arith.constant 640 : index
    %17 = vector.load %arg3[%c0_14, %c0_15, %c640] : memref<1x32x1024xf32, #tpu.memory_space<vmem>>, vector<1x32x128xf32>
    %18 = arith.addf %16, %17 : vector<1x32x128xf32>
    %c0_16 = arith.constant 0 : index
    %c0_17 = arith.constant 0 : index
    %c768 = arith.constant 768 : index
    %19 = vector.load %arg3[%c0_16, %c0_17, %c768] : memref<1x32x1024xf32, #tpu.memory_space<vmem>>, vector<1x32x128xf32>
    %20 = arith.addf %18, %19 : vector<1x32x128xf32>
    %c0_18 = arith.constant 0 : index
    %c0_19 = arith.constant 0 : index
    %c896 = arith.constant 896 : index
    %21 = vector.load %arg3[%c0_18, %c0_19, %c896] : memref<1x32x1024xf32, #tpu.memory_space<vmem>>, vector<1x32x128xf32>
    %22 = arith.addf %20, %21 : vector<1x32x128xf32>
    %c0_20 = arith.constant 0 : index
    %c0_21 = arith.constant 0 : index
    %c0_22 = arith.constant 0 : index
    %23 = vector.load %arg7[%c0_20, %c0_21, %c0_22] : memref<1x32x128xf32, #tpu.memory_space<vmem>>, vector<1x32x128xf32>
    %24 = arith.addf %23, %22 : vector<1x32x128xf32>
    %c0_23 = arith.constant 0 : index
    %c0_24 = arith.constant 0 : index
    %c0_25 = arith.constant 0 : index
    %25 = vector.load %arg7[%c0_23, %c0_24, %c0_25] : memref<1x32x128xf32, #tpu.memory_space<vmem>>, vector<1x32x128xf32>
    tpu.vector_store %arg7[%c0_23, %c0_24, %c0_25], %24 {strides = array<i32>} : memref<1x32x128xf32, #tpu.memory_space<vmem>>, vector<1x32x128xf32>,
    %c0_i32_26 = arith.constant 0 : i32
    %26 = arith.cmpi eq, %arg2, %c0_i32_26 : i32
    %27 = arith.extui %26 : i1 to i32
    %c0_i32_27 = arith.constant 0 : i32
    %28 = arith.cmpi ne, %27, %c0_i32_27 : i32
    scf.if %28 {
      %c0_31 = arith.constant 0 : index
      %c0_32 = arith.constant 0 : index
      %c0_33 = arith.constant 0 : index
      %34 = vector.load %arg7[%c0_31, %c0_32, %c0_33] : memref<1x32x128xf32, #tpu.memory_space<vmem>>, vector<1x32x128xf32>
      %cst = arith.constant dense<0.000000e+00> : vector<1x32xf32>
      %35 = vector.multi_reduction <add>, %34, %cst [2] : vector<1x32x128xf32> to vector<1x32xf32>
      %cst_34 = arith.constant 9.765625E-4 : f32
      %36 = vector.broadcast %cst_34 : f32 to vector<1x32xf32>
      %37 = arith.mulf %35, %36 : vector<1x32xf32>
      %c0_35 = arith.constant 0 : index
      %c0_36 = arith.constant 0 : index
      %38 = vector.load %arg8[%c0_35, %c0_36] : memref<1x16xf32, #tpu.memory_space<vmem>>, vector<1x16xf32>
      %c0_37 = arith.constant 0 : index
      %c0_38 = arith.constant 0 : index
      %39 = vector.load %arg4[%c0_37, %c0_38] : memref<32x16xf32, #tpu.memory_space<vmem>>, vector<32x16xf32>
      %cst_39 = arith.constant dense<0.000000e+00> : vector<1x16xf32>
      %40 = tpu.matmul %37, %39, %cst_39 {dimension_numbers = #tpu.dot_dimension_numbers<[1], [0], [0], [1], [0, 0, 1, 1], [], []>} : vector<1x32xf32>, vector<32x16xf32>, vector<1x16xf32> -> vector<1x16xf32>
      %41 = arith.addf %38, %40 : vector<1x16xf32>
      %c0_40 = arith.constant 0 : index
      %c0_41 = arith.constant 0 : index
      %42 = vector.load %arg8[%c0_40, %c0_41] : memref<1x16xf32, #tpu.memory_space<vmem>>, vector<1x16xf32>
      tpu.vector_store %arg8[%c0_40, %c0_41], %41 {strides = array<i32>} : memref<1x16xf32, #tpu.memory_space<vmem>>, vector<1x16xf32>,
    } else {
    }
    %c0_i32_28 = arith.constant 0 : i32
    %29 = arith.cmpi eq, %arg1, %c0_i32_28 : i32
    %c0_i32_29 = arith.constant 0 : i32
    %30 = arith.cmpi eq, %arg2, %c0_i32_29 : i32
    %31 = arith.andi %29, %30 : i1
    %32 = arith.extui %31 : i1 to i32
    %c0_i32_30 = arith.constant 0 : i32
    %33 = arith.cmpi ne, %32, %c0_i32_30 : i32
    scf.if %33 {
      %c0_31 = arith.constant 0 : index
      %c0_32 = arith.constant 0 : index
      %34 = vector.load %arg8[%c0_31, %c0_32] : memref<1x16xf32, #tpu.memory_space<vmem>>, vector<1x16xf32>
      %c0_33 = arith.constant 0 : index
      %c0_34 = arith.constant 0 : index
      %35 = vector.load %arg5[%c0_33, %c0_34] : memref<1x16xf32, #tpu.memory_space<vmem>>, vector<1x16xf32>
      %36 = arith.addf %34, %35 : vector<1x16xf32>
      %37 = vector.shape_cast %36 : vector<1x16xf32> to vector<1x1x16xf32>
      %c0_35 = arith.constant 0 : index
      %c0_36 = arith.constant 0 : index
      %c0_37 = arith.constant 0 : index
      %38 = vector.load %arg6[%c0_35, %c0_36, %c0_37] : memref<1x1x16xf32, #tpu.memory_space<vmem>>, vector<1x1x16xf32>
      tpu.vector_store %arg6[%c0_35, %c0_36, %c0_37], %37 {strides = array<i32>} : memref<1x1x16xf32, #tpu.memory_space<vmem>>, vector<1x1x16xf32>,
    } else {
    }
    return
  }
  func.func @transform_0(%arg0: i32, %arg1: i32, %arg2: i32) -> (i32, i32, i32) {
    %c0_i32 = arith.constant 0 : i32
    return %arg0, %arg1, %arg2 : i32, i32, i32
  }
  func.func @transform_1(%arg0: i32, %arg1: i32, %arg2: i32) -> (i32, i32) {
    %c0_i32 = arith.constant 0 : i32
    %c0_i32_0 = arith.constant 0 : i32
    return %arg1, %c0_i32 : i32, i32
  }
  func.func @transform_2(%arg0: i32, %arg1: i32, %arg2: i32) -> (i32, i32) {
    %c0_i32 = arith.constant 0 : i32
    %c0_i32_0 = arith.constant 0 : i32
    %c0_i32_1 = arith.constant 0 : i32
    return %c0_i32, %c0_i32_0 : i32, i32
  }
  func.func @transform_3(%arg0: i32, %arg1: i32, %arg2: i32) -> (i32, i32, i32) {
    %c0_i32 = arith.constant 0 : i32
    %c0_i32_0 = arith.constant 0 : i32
    %c0_i32_1 = arith.constant 0 : i32
    return %arg0, %c0_i32, %c0_i32_0 : i32, i32, i32
  }
}

</mosaic_0001>

<llo_original>
// kernel: tpu_custom_call.1
$region0: #{tpu_custom_call.1}
  #allocation0 [shape = 'u32[]', space=smem, size = 0x4, offset = 0x4, fixed_abs, tag = 'smem constant byte address 0x4 - core index']
  #allocation1 [shape = 'u32[144,128]{1,0:T(1,128)}', space=vmem, size = 0x12000, scoped, tag = 'internal scratch']
  #allocation2 [shape = 'f32[1,32,128]{2,1,0:T(8,128)}', space=vmem, size = 0x4000, scoped, tag = 'scratch operand']
  #allocation3 [shape = 'f32[1,16]{1,0:T(1,128)}', space=vmem, size = 0x200, scoped, tag = 'scratch operand']
  %s0 = inlined_call_operand.hbm [shape: f32[2,32,1024], index: 0, kind: input, shape index: {}]
  %s1 = inlined_call_operand.vmem [shape: f32[32,16], index: 1, kind: input, shape index: {}]
  %s2 = inlined_call_operand.vmem [shape: f32[1,16], index: 2, kind: input, shape index: {}]
  %s3 = inlined_call_operand.hbm [shape: f32[2,1,16], index: 3, kind: output, shape index: {}]
  %s4 = sld [smem:[#allocation0]]
  $region65: #{tpu_custom_call.1} parent=0
    _
  %s6 = ssub.s32 1, %s4
  %s7 = scalar_select 0, %s6, %s4
  $region1: #{tpu_custom_call.1} parent=0
    #allocation4 [shape = 'u8[262144]{0}', space=vmem, size = 0x40000, scoped, tag = 'input window, operand 0']
    #allocation5 [shape = 's32[2]{0}', space=sflag, size = 0x8, scoped, tag = 'scoped memory for tpu_custom_call.1']
    #allocation6 [shape = 's32[2]{0}', space=sflag, size = 0x8, scoped, tag = 'scoped memory for tpu_custom_call.1']
    #allocation7 [shape = 'u8[1024]{0}', space=vmem, size = 0x400, scoped, tag = 'output window, operand 0']
    %8 = vsyncpa [#allocation5], 0
    %s9 = scalar_lea.sflag [#allocation5], 1
    %10 = vsyncpa %s9, 0
    %11 = vsyncpa [#allocation6], 0
    %s12 = scalar_lea.sflag [#allocation6], 1
    %13 = vsyncpa %s12, 0
    loop: start=0, step=1, limit=4
    $region2: #{tpu_custom_call.1} parent=1 // loop_pre_header
      _
    $region3: #{tpu_custom_call.1} parent=1 // loop_header
      %s15 = sphi 0, %s19
      %p16 = scmp.ge.s32.totalorder %s15, 4
      %s22 = sphi 0, %s41
      %s23 = sphi 0, %s37
      %s24 = sphi 0, %s33
      %s25 = sphi 0, %s22
      %s26 = sphi 0, %s23
      %s27 = sphi 0, %s24
      %s28 = sphi 0, %s25
      %s29 = sphi 0, %s26
      %s30 = sphi 0, %s27
      %s48 = sphi 0, %s50
      %s51 = sphi 0, %s48
      %s52 = sphi 0, %s51
      %s68 = sphi 0, %s52
      %s74 = sphi 0, %s76
      %s77 = sphi 0, %s74
      %s78 = sphi 0, %s77
      %s94 = sphi 0, %s78
      %s98 = sphi 0, %s98
      %s100 = sphi 0, %s98
      %s101 = sphi 0, %s100
      %s115 = sphi 0, %s101
      %s121 = sphi 0, %s123
      %s124 = sphi 0, %s121
      %s125 = sphi 0, %s124
      %s141 = sphi 0, %s125
    $region4: #{tpu_custom_call.1} parent=1 // loop_header_branch
      %18 = sbr.rel (%p16) target = $region8
    $region5: #{tpu_custom_call.1} parent=1 // loop_body
      %s20 = ssub.s32 %s15, 1
      %s21 = ssub.s32 %s15, 2
      %s31 = sadd.s32 1, %s24
      %p32 = scmp.ge.s32.totalorder %s31, 1
      %s33 = scalar_select %p32, 0, %s31
      %s34 = sadd.s32 1, %s23
      %s35 = scalar_select %p32, %s34, %s23
      %p36 = scmp.ge.s32.totalorder %s35, 1
      %s37 = scalar_select %p36, 0, %s35
      %s38 = sadd.s32 1, %s22
      %s39 = scalar_select %p36, %s38, %s22
      %p40 = scmp.ge.s32.totalorder %s39, 2
      %s41 = scalar_select %p40, 0, %s39
      %s42 = ssub.s32 %s22, %s41
      %s43 = ssub.s32 %s23, %s37
      %s44 = sor.u32 %s42, %s43
      %s45 = ssub.s32 %s24, %s33
      %s46 = sor.u32 %s44, %s45
      %p47 = scmp.eq.s32.totalorder %s46, 0
      %s49 = sadd.s32 %s48, 1
      %s50 = scalar_select %p47, %s48, %s49
      %p53 = pneg %p47
      %p54 = scmp.eq.s32.totalorder %s15, 1
      %p55 = por %p53, %p54
      %p56 = scmp.ne.s32.totalorder %s48, %s51
      %p57 = scmp.eq.s32.totalorder %s15, 0
      %p58 = por %p56, %p57
      %p59 = scmp.ne.s32.totalorder %s48, %s51
      %p60 = scmp.eq.s32.totalorder %s20, 1
      %p61 = por %p59, %p60
      %p62 = scmp.ne.s32.totalorder %s51, %s52
      %p63 = scmp.eq.s32.totalorder %s20, 0
      %p64 = por %p62, %p63
      %p65 = scmp.ne.s32.totalorder %s51, %s52
      %p66 = scmp.eq.s32.totalorder %s21, 1
      %p67 = por %p65, %p66
      %p69 = scmp.ne.s32.totalorder %s52, %s68
      %p70 = scmp.eq.s32.totalorder %s21, 0
      %p71 = por %p69, %p70
      %s72 = ssub.s32 %s23, %s37
      %p73 = scmp.eq.s32.totalorder %s72, 0
      %s75 = sadd.s32 %s74, 1
      %s76 = scalar_select %p73, %s74, %s75
      %p79 = pneg %p73
      %p80 = scmp.eq.s32.totalorder %s15, 1
      %p81 = por %p79, %p80
      %p82 = scmp.ne.s32.totalorder %s74, %s77
      %p83 = scmp.eq.s32.totalorder %s15, 0
      %p84 = por %p82, %p83
      %p85 = scmp.ne.s32.totalorder %s74, %s77
      %p86 = scmp.eq.s32.totalorder %s20, 1
      %p87 = por %p85, %p86
      %p88 = scmp.ne.s32.totalorder %s77, %s78
      %p89 = scmp.eq.s32.totalorder %s20, 0
      %p90 = por %p88, %p89
      %p91 = scmp.ne.s32.totalorder %s77, %s78
      %p92 = scmp.eq.s32.totalorder %s21, 1
      %p93 = por %p91, %p92
      %p95 = scmp.ne.s32.totalorder %s78, %s94
      %p96 = scmp.eq.s32.totalorder %s21, 0
      %p97 = por %p95, %p96
      %s99 = sadd.s32 %s98, 1
      %p102 = scmp.eq.s32.totalorder %s15, 1
      %p103 = scmp.ne.s32.totalorder %s98, %s100
      %p104 = scmp.eq.s32.totalorder %s15, 0
      %p105 = por %p103, %p104
      %p106 = scmp.ne.s32.totalorder %s98, %s100
      %p107 = scmp.eq.s32.totalorder %s20, 1
      %p108 = por %p106, %p107
      %p109 = scmp.ne.s32.totalorder %s100, %s101
      %p110 = scmp.eq.s32.totalorder %s20, 0
      %p111 = por %p109, %p110
      %p112 = scmp.ne.s32.totalorder %s100, %s101
      %p113 = scmp.eq.s32.totalorder %s21, 1
      %p114 = por %p112, %p113
      %p116 = scmp.ne.s32.totalorder %s101, %s115
      %p117 = scmp.eq.s32.totalorder %s21, 0
      %p118 = por %p116, %p117
      %s119 = ssub.s32 %s22, %s41
      %p120 = scmp.eq.s32.totalorder %s119, 0
      %s122 = sadd.s32 %s121, 1
      %s123 = scalar_select %p120, %s121, %s122
      %p126 = pneg %p120
      %p127 = scmp.eq.s32.totalorder %s15, 1
      %p128 = por %p126, %p127
      %p129 = scmp.ne.s32.totalorder %s121, %s124
      %p130 = scmp.eq.s32.totalorder %s15, 0
      %p131 = por %p129, %p130
      %p132 = scmp.ne.s32.totalorder %s121, %s124
      %p133 = scmp.eq.s32.totalorder %s20, 1
      %p134 = por %p132, %p133
      %p135 = scmp.ne.s32.totalorder %s124, %s125
      %p136 = scmp.eq.s32.totalorder %s20, 0
      %p137 = por %p135, %p136
      %p138 = scmp.ne.s32.totalorder %s124, %s125
      %p139 = scmp.eq.s32.totalorder %s21, 1
      %p140 = por %p138, %p139
      %p142 = scmp.ne.s32.totalorder %s125, %s141
      %p143 = scmp.eq.s32.totalorder %s21, 0
      %p144 = por %p142, %p143
      %p145 = scmp.le.s32.totalorder 1, %s15
      %p146 = scmp.lt.s32.totalorder %s15, 3
      %p147 = pnand %p145, %p146
      %p148 = pneg %p147
      // Predicated region
      $region9: #{tpu_custom_call.1} parent=5 // pred_check
        _
      $region10: #{tpu_custom_call.1} parent=5 // pred_check_branch
        %150 = sbr.rel (%p147) target = $region12
      $region11: #{tpu_custom_call.1} parent=5 // pred_region
        %s151 = ssub.s32 %s15, 1
        // Predicated region
        $region13: #{tpu_custom_call.1} parent=11 // pred_check
          %p152 = pneg %p90
        $region14: #{tpu_custom_call.1} parent=11 // pred_check_branch
          %154 = sbr.rel (%p152) target = $region16
        $region15: #{tpu_custom_call.1} parent=11 // pred_region
          %s155 = smul.u32 4, %s26
          %p156 = scmp.lt.s32.totalorder %s155, 3
          %s157 = scalar_select %p156, %s155, 3
          %s158 = smul.addr %s157, 8
          %s159 = scalar_lea.vmem %s1, %s158
          %s160 = smul.u32 4, %s26
        $region16: #{tpu_custom_call.1} parent=11 // pred_fallthru
          _
        // Predicated region
        $region17: #{tpu_custom_call.1} parent=11 // pred_check
          %p161 = pneg %p111
        $region18: #{tpu_custom_call.1} parent=11 // pred_check_branch
          %163 = sbr.rel (%p161) target = $region20
        $region19: #{tpu_custom_call.1} parent=11 // pred_region
          _
        $region20: #{tpu_custom_call.1} parent=11 // pred_fallthru
          _
      $region12: #{tpu_custom_call.1} parent=5 // pred_fallthru
        _
      %p164 = scmp.lt.s32.totalorder %s15, 2
      // Predicated region
      $region21: #{tpu_custom_call.1} parent=5 // pred_check
        %p165 = pneg %p164
      $region22: #{tpu_custom_call.1} parent=5 // pred_check_branch
        %167 = sbr.rel (%p165) target = $region24
      $region23: #{tpu_custom_call.1} parent=5 // pred_region
        // Predicated region
        $region25: #{tpu_custom_call.1} parent=23 // pred_check
          %p168 = pneg %p58
        $region26: #{tpu_custom_call.1} parent=23 // pred_check_branch
          %170 = sbr.rel (%p168) target = $region28
        $region27: #{tpu_custom_call.1} parent=23 // pred_region
          %s171 = sand.u32 %s48, 1
          %s172 = scalar_lea.sflag [#allocation5], %s171
          %s173 = sand.u32 %s48, 1
          %s174 = smul.addr %s173, 256
          %s175 = scalar_lea.vmem [#allocation4], %s174
          %s176 = smul.u32 4, %s23
          %s177 = smul.u32 8, %s24
          %s179 = ssub.s32 4096, 4096
          %180 = vsyncadd %s172, %s179
          %s181 = smul.addr %s176, 8
          %s182 = sadd.s32 %s177, %s181
          %s183 = smul.addr %s22, 32
          %s184 = sadd.s32 %s182, %s183
          %s185 = smul.addr %s184, 128
          %s186 = scalar_lea.hbm %s0, %s185
          %s187 = sshll.u32 %s175, 4
          %s188 = int_to_ptr.vmem [resolvable:$true] %s187
          %193 = dma.hbm_to_vmem [thread:$0]  %s186, 4096, %s188, %s172, 1024, 1024, 64
        $region28: #{tpu_custom_call.1} parent=23 // pred_fallthru
          _
      $region24: #{tpu_custom_call.1} parent=5 // pred_fallthru
        _
      %p194 = scmp.le.s32.totalorder 1, %s15
      %p195 = scmp.lt.s32.totalorder %s15, 3
      %p196 = pnand %p194, %p195
      %p197 = pneg %p196
      // Predicated region
      $region29: #{tpu_custom_call.1} parent=5 // pred_check
        _
      $region30: #{tpu_custom_call.1} parent=5 // pred_check_branch
        %199 = sbr.rel (%p196) target = $region32
      $region31: #{tpu_custom_call.1} parent=5 // pred_region
        %s200 = ssub.s32 %s15, 1
        %s201 = sand.u32 %s51, 1
        %s202 = scalar_lea.sflag [#allocation5], %s201
        %s203 = sand.u32 %s51, 1
        %s204 = smul.addr %s203, 256
        %s205 = scalar_lea.vmem [#allocation4], %s204
        // Predicated region
        $region33: #{tpu_custom_call.1} parent=31 // pred_check
          %p206 = pneg %p64
        $region34: #{tpu_custom_call.1} parent=31 // pred_check_branch
          %208 = sbr.rel (%p206) target = $region36
        $region35: #{tpu_custom_call.1} parent=31 // pred_region
          %209 = dma.done %s202, 4096
        $region36: #{tpu_custom_call.1} parent=31 // pred_fallthru
          _
        %s210 = sand.u32 %s51, 1
        %s211 = scalar_lea.sflag [#allocation5], %s210
        %s212 = sand.u32 %s51, 1
        %s213 = smul.addr %s212, 256
        %s214 = scalar_lea.vmem [#allocation4], %s213
        %p215 = pneg %p64
        %p216 = pneg %p61
        %s217 = smul.u32 4, %s26
        %p218 = scmp.lt.s32.totalorder %s217, 3
        %s219 = scalar_select %p218, %s217, 3
        %s220 = smul.addr %s219, 8
        %s221 = scalar_lea.vmem %s1, %s220
        %p222 = pneg %p90
        %p223 = pneg %p87
        %p224 = pneg %p111
        %p225 = pneg %p108
        %p226 = pneg %p137
        %p227 = pneg %p134
        %s228 = sand.u32 %s124, 1
        %s229 = scalar_lea.sflag [#allocation6], %s228
        %s230 = sand.u32 %s124, 1
        %s231 = scalar_lea.vmem [#allocation7], %s230
        %s232 = smul.u32 4, %s26
        %s233 = smul.u32 8, %s27
        %s234 = smul.u32 4, %s26
        %p235 = scmp.lt.s32.totalorder %s234, 3
        %s236 = scalar_select %p235, %s234, 3
        %s237 = smul.addr %s236, 8
        %s238 = scalar_lea.vmem %s1, %s237
        %s239 = smul.u32 4, %s26
        %p240 = scmp.eq.s32.totalorder %s27, 0
        // Predicated region
        $region37: #{tpu_custom_call.1} parent=31 // pred_check
          %p241 = pneg %p240
        $region38: #{tpu_custom_call.1} parent=31 // pred_check_branch
          %243 = sbr.rel (%p241) target = $region40
        $region39: #{tpu_custom_call.1} parent=31 // pred_region
          %244 = vst [vmem:[#allocation2] sm:$0xff] 0.0
          %245 = vst [vmem:[#allocation2 + $0x8] sm:$0xff] 0.0
          %246 = vst [vmem:[#allocation2 + $0x10] sm:$0xff] 0.0
          %247 = vst [vmem:[#allocation2 + $0x18] sm:$0xff] 0.0
        $region40: #{tpu_custom_call.1} parent=31 // pred_fallthru
          _
        %p248 = scmp.eq.s32.totalorder %s26, 0
        %p249 = pnand %p248, %p240
        %p250 = pneg %p249
        // Predicated region
        $region41: #{tpu_custom_call.1} parent=31 // pred_check
          _
        $region42: #{tpu_custom_call.1} parent=31 // pred_check_branch
          %252 = sbr.rel (%p249) target = $region44
        $region43: #{tpu_custom_call.1} parent=31 // pred_region
          %vm253 = vcmask 122880
          %254 = vst.msk [vmem:[#allocation3] sm:$0x1] %vm253, 0.0
        $region44: #{tpu_custom_call.1} parent=31 // pred_fallthru
          _
        %v255 = vld [vmem:[%s205] sm:$0xff]
        %v256 = vld [vmem:[%s205 + $0x40] sm:$0xff]
        %v257 = vld [vmem:[%s205 + $0x80] sm:$0xff]
        %v258 = vld [vmem:[%s205 + $0xc0] sm:$0xff]
        %v259 = vld [vmem:[%s205 + $0x8] sm:$0xff]
        %v260 = vld [vmem:[%s205 + $0x48] sm:$0xff]
        %v261 = vld [vmem:[%s205 + $0x88] sm:$0xff]
        %v262 = vld [vmem:[%s205 + $0xc8] sm:$0xff]
        %v263 = vadd.f32 %v255, %v259
        %v264 = vadd.f32 %v256, %v260
        %v265 = vadd.f32 %v257, %v261
        %v266 = vadd.f32 %v258, %v262
        %v267 = vld [vmem:[%s205 + $0x10] sm:$0xff]
        %v268 = vld [vmem:[%s205 + $0x50] sm:$0xff]
        %v269 = vld [vmem:[%s205 + $0x90] sm:$0xff]
        %v270 = vld [vmem:[%s205 + $0xd0] sm:$0xff]
        %v271 = vadd.f32 %v263, %v267
        %v272 = vadd.f32 %v264, %v268
        %v273 = vadd.f32 %v265, %v269
        %v274 = vadd.f32 %v266, %v270
        %v275 = vld [vmem:[%s205 + $0x18] sm:$0xff]
        %v276 = vld [vmem:[%s205 + $0x58] sm:$0xff]
        %v277 = vld [vmem:[%s205 + $0x98] sm:$0xff]
        %v278 = vld [vmem:[%s205 + $0xd8] sm:$0xff]
        %v279 = vadd.f32 %v271, %v275
        %v280 = vadd.f32 %v272, %v276
        %v281 = vadd.f32 %v273, %v277
        %v282 = vadd.f32 %v274, %v278
        %v283 = vld [vmem:[%s205 + $0x20] sm:$0xff]
        %v284 = vld [vmem:[%s205 + $0x60] sm:$0xff]
        %v285 = vld [vmem:[%s205 + $0xa0] sm:$0xff]
        %v286 = vld [vmem:[%s205 + $0xe0] sm:$0xff]
        %v287 = vadd.f32 %v279, %v283
        %v288 = vadd.f32 %v280, %v284
        %v289 = vadd.f32 %v281, %v285
        %v290 = vadd.f32 %v282, %v286
        %v291 = vld [vmem:[%s205 + $0x28] sm:$0xff]
        %v292 = vld [vmem:[%s205 + $0x68] sm:$0xff]
        %v293 = vld [vmem:[%s205 + $0xa8] sm:$0xff]
        %v294 = vld [vmem:[%s205 + $0xe8] sm:$0xff]
        %v295 = vadd.f32 %v287, %v291
        %v296 = vadd.f32 %v288, %v292
        %v297 = vadd.f32 %v289, %v293
        %v298 = vadd.f32 %v290, %v294
        %v299 = vld [vmem:[%s205 + $0x30] sm:$0xff]
        %v300 = vld [vmem:[%s205 + $0x70] sm:$0xff]
        %v301 = vld [vmem:[%s205 + $0xb0] sm:$0xff]
        %v302 = vld [vmem:[%s205 + $0xf0] sm:$0xff]
        %v303 = vadd.f32 %v295, %v299
        %v304 = vadd.f32 %v296, %v300
        %v305 = vadd.f32 %v297, %v301
        %v306 = vadd.f32 %v298, %v302
        %v307 = vld [vmem:[%s205 + $0x38] sm:$0xff]
        %v308 = vld [vmem:[%s205 + $0x78] sm:$0xff]
        %v309 = vld [vmem:[%s205 + $0xb8] sm:$0xff]
        %v310 = vld [vmem:[%s205 + $0xf8] sm:$0xff]
        %v311 = vadd.f32 %v303, %v307
        %v312 = vadd.f32 %v304, %v308
        %v313 = vadd.f32 %v305, %v309
        %v314 = vadd.f32 %v306, %v310
        %v315 = vld [vmem:[#allocation2] sm:$0xff]
        %v316 = vld [vmem:[#allocation2 + $0x8] sm:$0xff]
        %v317 = vld [vmem:[#allocation2 + $0x10] sm:$0xff]
        %v318 = vld [vmem:[#allocation2 + $0x18] sm:$0xff]
        %v319 = vadd.f32 %v315, %v311
        %v320 = vadd.f32 %v316, %v312
        %v321 = vadd.f32 %v317, %v313
        %v322 = vadd.f32 %v318, %v314
        %323 = vst [vmem:[#allocation2] sm:$0xff] %v319
        %324 = vst [vmem:[#allocation2 + $0x8] sm:$0xff] %v320
        %325 = vst [vmem:[#allocation2 + $0x10] sm:$0xff] %v321
        %326 = vst [vmem:[#allocation2 + $0x18] sm:$0xff] %v322
        // Predicated region
        $region45: #{tpu_custom_call.1} parent=31 // pred_check
          %p327 = pneg %p240
        $region46: #{tpu_custom_call.1} parent=31 // pred_check_branch
          %329 = sbr.rel (%p327) target = $region48
        $region47: #{tpu_custom_call.1} parent=31 // pred_region
          %v330 = vld [vmem:[#allocation2] sm:$0xff]
          %v331 = vld [vmem:[#allocation2 + $0x8] sm:$0xff]
          %v332 = vld [vmem:[#allocation2 + $0x10] sm:$0xff]
          %v333 = vld [vmem:[#allocation2 + $0x18] sm:$0xff]
          %334 = vadd.xlane.f32.xlu0 %v330
          %v335 = vpop.xlane.xlu0 %334
          %336 = vadd.xlane.f32.xlu0 %v331
          %v337 = vpop.xlane.xlu0 %336
          %338 = vadd.xlane.f32.xlu0 %v332
          %v339 = vpop.xlane.xlu0 %338
          %340 = vadd.xlane.f32.xlu0 %v333
          %v341 = vpop.xlane.xlu0 %340
          %v342 = vmul.f32 %v335, 0.0009765625
          %v343 = vmul.f32 %v337, 0.0009765625
          %v344 = vmul.f32 %v339, 0.0009765625
          %v345 = vmul.f32 %v341, 0.0009765625
          %v346 = vld [vmem:[#allocation3] sm:$0x1]
          %v347 = vld [vmem:[%s238] sm:$0xff]
          %v348 = vld [vmem:[%s238 + $0x8] sm:$0xff]
          %v349 = vld [vmem:[%s238 + $0x10] sm:$0xff]
          %v350 = vld [vmem:[%s238 + $0x18] sm:$0xff]
          %v355 = vlaneseq
          %v356 = vand.u32 %v355, 127
          %v357 = vlaneseq
          %v358 = vshrl.u32 %v357, 7
          %v359 = vsub.s32 %v356, %v358
          %v360 = vrot.slane %v342, %v359
          %v361 = vadd.s32 %v356, 4294967288
          %v362 = vlaneseq
          %v363 = vshrl.u32 %v362, 7
          %v364 = vsub.s32 %v361, %v363
          %v365 = vrot.slane %v343, %v364
          %vm366 = vcmask 130112
          %v367 = vsel %vm366, %v365, %v360
          %v368 = vadd.s32 %v356, 4294967280
          %v369 = vlaneseq
          %v370 = vshrl.u32 %v369, 7
          %v371 = vsub.s32 %v368, %v370
          %v372 = vrot.slane %v344, %v371
          %vm373 = vcmask 195712
          %v374 = vsel %vm373, %v372, %v367
          %v375 = vadd.s32 %v356, 4294967272
          %v376 = vlaneseq
          %v377 = vshrl.u32 %v376, 7
          %v378 = vsub.s32 %v375, %v377
          %v379 = vrot.slane %v345, %v378
          %vm380 = vcmask 261312
          %v381 = vsel %vm380, %v379, %v374
          %vm382 = vcmask 261120
          %v383 = vsel %vm382, %v381, 0
          %385 = vmatprep.subr.mxu0 0.0
          %386 = vmatpush1.msra.mxu0 0.0
          %387 = vmatprep.subr.mxu0 0.0
          %388 = vmatpush1.msra.mxu0 0.0
          %389 = vmatprep.subr.mxu0 0.0
          %390 = vmatpush1.msra.mxu0 0.0
          %391 = vmatprep.subr.mxu0 0.0
          %392 = vmatpush1.msra.mxu0 0.0
          %393 = vmatprep.subr.mxu0 0.0
          %394 = vmatpush1.msra.mxu0 0.0
          %395 = vmatprep.subr.mxu0 0.0
          %396 = vmatpush1.msra.mxu0 0.0
          %397 = vmatprep.subr.mxu0 0.0
          %398 = vmatpush1.msra.mxu0 0.0
          %399 = vmatprep.subr.mxu0 0.0
          %400 = vmatpush1.msra.mxu0 0.0
          %401 = vmatprep.subr.mxu0 0.0
          %402 = vmatpush1.msra.mxu0 0.0
          %403 = vmatprep.subr.mxu0 0.0
          %404 = vmatpush1.msra.mxu0 0.0
          %405 = vmatprep.subr.mxu0 0.0
          %406 = vmatpush1.msra.mxu0 0.0
          %407 = vmatprep.subr.mxu0 0.0
          %408 = vmatpush1.msra.mxu0 0.0
          %409 = vmatprep.subr.mxu0 0.0
          %410 = vmatpush1.msra.mxu0 %v350
          %411 = vmatprep.subr.mxu0 0.0
          %412 = vmatpush1.msra.mxu0 %v349
          %413 = vmatprep.subr.mxu0 0.0
          %414 = vmatpush1.msra.mxu0 %v348
          %415 = vmatprep.subr.mxu0 0.0
          %416 = vmatpush1.msra.mxu0 %v347
          %417 = vmatprep.subr.mxu0 0.0
          %418 = vmatpush2.msra.mxu0 0.0
          %419 = vmatprep.subr.mxu0 0.0
          %420 = vmatpush2.msra.mxu0 0.0
          %421 = vmatprep.subr.mxu0 0.0
          %422 = vmatpush2.msra.mxu0 0.0
          %423 = vmatprep.subr.mxu0 0.0
          %424 = vmatpush2.msra.mxu0 0.0
          %425 = vmatprep.subr.mxu0 0.0
          %426 = vmatpush2.msra.mxu0 0.0
          %427 = vmatprep.subr.mxu0 0.0
          %428 = vmatpush2.msra.mxu0 0.0
          %429 = vmatprep.subr.mxu0 0.0
          %430 = vmatpush2.msra.mxu0 0.0
          %431 = vmatprep.subr.mxu0 0.0
          %432 = vmatpush2.msra.mxu0 0.0
          %433 = vmatprep.subr.mxu0 0.0
          %434 = vmatpush2.msra.mxu0 0.0
          %435 = vmatprep.subr.mxu0 0.0
          %436 = vmatpush2.msra.mxu0 0.0
          %437 = vmatprep.subr.mxu0 0.0
          %438 = vmatpush2.msra.mxu0 0.0
          %439 = vmatprep.subr.mxu0 0.0
          %440 = vmatpush2.msra.mxu0 0.0
          %441 = vmatprep.subr.mxu0 0.0
          %442 = vmatpush2.msra.mxu0 0.0
          %443 = vmatprep.subr.mxu0 0.0
          %444 = vmatpush2.msra.mxu0 0.0
          %445 = vmatprep.subr.mxu0 0.0
          %446 = vmatpush2.msra.mxu0 0.0
          %447 = vmatprep.subr.mxu0 0.0
          %448 = vmatpush2.msra.mxu0 0.0
          %449 = vmatprep.mubr.f32.mxu0 0.0
          %450 = vmatmul.mubr.f32.gmra.mxu0 %v383
          %v451 = vpop.f32.mrf.mxu0
          %v452 = vadd.f32 0.0, %v451
          %v453 = vpop.f32.mrf.mxu0
          %454 = vdwg.mxu0
          %v455 = vadd.f32 %v346, %v452
          %vm456 = vcmask 122880
          %457 = vst.msk [vmem:[#allocation3] sm:$0x1] %vm456, %v455
        $region48: #{tpu_custom_call.1} parent=31 // pred_fallthru
          _
        // Predicated region
        $region49: #{tpu_custom_call.1} parent=31 // pred_check
          _
        $region50: #{tpu_custom_call.1} parent=31 // pred_check_branch
          %459 = sbr.rel (%p249) target = $region52
        $region51: #{tpu_custom_call.1} parent=31 // pred_region
          %v460 = vld [vmem:[#allocation3] sm:$0x1]
          %v461 = vld [vmem:[%s2] sm:$0x1]
          %v462 = vadd.f32 %v460, %v461
          %vm463 = vcmask 122880
          %464 = vst.msk [vmem:[%s231] sm:$0x1] %vm463, %v462
        $region52: #{tpu_custom_call.1} parent=31 // pred_fallthru
          _
        %s465 = sand.u32 %s124, 1
        %s466 = scalar_lea.sflag [#allocation6], %s465
        %s467 = sand.u32 %s124, 1
        %s468 = scalar_lea.vmem [#allocation7], %s467
        // Predicated region
        $region53: #{tpu_custom_call.1} parent=31 // pred_check
          %p469 = pneg %p134
        $region54: #{tpu_custom_call.1} parent=31 // pred_check_branch
          %471 = sbr.rel (%p469) target = $region56
        $region55: #{tpu_custom_call.1} parent=31 // pred_region
          %s473 = ssub.s32 16, 16
          %474 = vsyncadd %s466, %s473
          %s475 = smul.addr %s25, 16
          %s476 = scalar_lea.hbm %s3, %s475
          %s478 = sshll.u32 %s468, 4
          %s479 = int_to_ptr.vmem [resolvable:$true] %s478
          %481 = dma.vmem_to_hbm [thread:$0]  %s479, 16, %s476, %s466
        $region56: #{tpu_custom_call.1} parent=31 // pred_fallthru
          _
      $region32: #{tpu_custom_call.1} parent=5 // pred_fallthru
        _
      %p482 = scmp.le.s32.totalorder 2, %s15
      // Predicated region
      $region57: #{tpu_custom_call.1} parent=5 // pred_check
        %p483 = pneg %p482
      $region58: #{tpu_custom_call.1} parent=5 // pred_check_branch
        %485 = sbr.rel (%p483) target = $region60
      $region59: #{tpu_custom_call.1} parent=5 // pred_region
        %s486 = ssub.s32 %s15, 2
        // Predicated region
        $region61: #{tpu_custom_call.1} parent=59 // pred_check
          %p487 = pneg %p140
        $region62: #{tpu_custom_call.1} parent=59 // pred_check_branch
          %489 = sbr.rel (%p487) target = $region64
        $region63: #{tpu_custom_call.1} parent=59 // pred_region
          %s490 = sand.u32 %s125, 1
          %s491 = scalar_lea.sflag [#allocation6], %s490
          %s492 = sand.u32 %s125, 1
          %s493 = scalar_lea.vmem [#allocation7], %s492
          %494 = dma.done %s491, 16
        $region64: #{tpu_custom_call.1} parent=59 // pred_fallthru
          _
      $region60: #{tpu_custom_call.1} parent=5 // pred_fallthru
        _
    $region6: #{tpu_custom_call.1} parent=1 // loop_footer
      %s19 = sadd.s32 1, %s15
    $region7: #{tpu_custom_call.1} parent=1 // loop_footer_branch
      %14 = sbr.rel target = $region3
    $region8: #{tpu_custom_call.1} parent=1 // loop_exit
      _
    %495 = vsyncpa [#allocation5], 1
    %s496 = scalar_lea.sflag [#allocation5], 1
    %497 = vsyncpa %s496, 1
    %498 = vsyncpa [#allocation6], 1
    %s499 = scalar_lea.sflag [#allocation6], 1
    %500 = vsyncpa %s499, 1

</llo_original>
